<compile_context>
chip_gen: v5e
topology: v5e:2x2
jax: 0.10.0
libtpu: 0.0.40
codegen_flags: <defaults>
</compile_context>

<pallas_src>
import functools

import jax
import jax.numpy as jnp
from jax import lax
from jax.experimental import pallas as pl
from jax.experimental.pallas import tpu as pltpu

_LANE = 128


def _round_up(a, b):
    return -(-a // b) * b


def _box_sum_1d(x, axis, r):
    """(2r+1)-tap zero-padded box *sum* along `axis` (static unroll, exact adds)."""
    if r == 0:
        return x
    n = x.shape[axis]
    pad_shape = list(x.shape)
    pad_shape[axis] = r
    z = jnp.zeros(pad_shape, dtype=x.dtype)
    xp = jnp.concatenate([z, x, z], axis=axis)          # (..., n + 2r, ...)
    acc = lax.slice_in_dim(xp, 0, n, axis=axis)          # first tap
    for d in range(1, 2 * r + 1):                        # static unroll over taps
        acc = acc + lax.slice_in_dim(xp, d, d + n, axis=axis)
    return acc


def _box_filter_kernel(x_ref, o_ref, *, r, w_axis, h_axis):
    # x_ref / o_ref: one VMEM block; channel axis is whichever axis is neither
    # w_axis nor h_axis (lanes in the channels-last layout).
    k = 2 * r + 1
    x = x_ref[...].astype(jnp.float32)      # single upcast; f32 accumulation
    acc = _box_sum_1d(x, w_axis, r)         # (1, k) horizontal pass
    acc = _box_sum_1d(acc, h_axis, r)       # (k, 1) vertical pass
    # single folded scale 1/k^2 (instead of 1/k after each pass)
    o_ref[...] = (acc * jnp.float32(1.0 / (k * k))).astype(o_ref.dtype)


def box_filter(x, r, *, block_channels=None, vmem_target_bytes=32 * 1024 * 1024):
    """Separable (2r+1)x(2r+1) zero-padded box average of x: (B, C, H, W)."""
    B, C, H, W = x.shape
    BC = B * C
    r = int(r)
    k = 2 * r + 1
    itemsize = jnp.dtype(x.dtype).itemsize

    # --- VMEM budget, generation-aware (v5e/v6e: 128 MiB, v7x: 64 MiB) -------
    try:
        phys_vmem = int(pltpu.get_tpu_info().vmem_capacity_bytes)
    except Exception:
        phys_vmem = 64 * 1024 * 1024          # conservative (v7x) fallback
    vmem_cap = min(48 * 1024 * 1024, (phys_vmem * 3) // 4)   # keep headroom
    target = max(4 * 1024 * 1024, min(int(vmem_target_bytes), vmem_cap))

    # Per-channel working set: double-buffered in+out blocks plus the f32
    # temporaries of the two padded passes.
    f32_tmp = (H * (W + 2 * r) + (H + 2 * r) * W + 2 * H * W) * 4
    per_chan = 4 * H * W * itemsize + f32_tmp
    budget = max(1, target // per_chan)

    channels_last = (W % _LANE) != 0
    if channels_last:
        # Lane-dense layout: (H, W, BC) with the folded channel axis on lanes,
        # so every vector load/store is full-width even for small W.
        if BC >= _LANE:
            if block_channels is None:
                nc = max(_LANE, (min(budget, BC) // _LANE) * _LANE)
            else:
                nc = max(_LANE, (int(block_channels) // _LANE) * _LANE)
            nblk = max(1, -(-BC // nc))
            nc = _round_up(-(-BC // nblk), _LANE)     # balance blocks, pad BC
        else:
            nc = BC                                    # full axis (tiny tensor)
            nblk = 1
        BC_pad = nblk * nc
        w_axis, h_axis = 1, 0
        xk = jnp.transpose(x, (2, 3, 0, 1)).reshape(H, W, BC)
        if BC_pad != BC:
            xk = jnp.pad(xk, ((0, 0), (0, 0), (0, BC_pad - BC)))
        block = (H, W, nc)
        index_map = lambda i: (0, 0, i)
        out_shape = jax.ShapeDtypeStruct((H, W, BC_pad), x.dtype)
    else:
        # W already a multiple of 128: keep native layout (no wrapper transposes).
        if block_channels is None:
            nc = max(1, min(budget, BC))
        else:
            nc = max(1, min(int(block_channels), BC))
        nblk = max(1, -(-BC // nc))
        nc = -(-BC // nblk)
        BC_pad = nblk * nc
        w_axis, h_axis = 2, 1
        xk = x.reshape(BC, H, W)
        if BC_pad != BC:
            xk = jnp.pad(xk, ((0, BC_pad - BC), (0, 0), (0, 0)))
        block = (nc, H, W)
        index_map = lambda i: (i, 0, 0)
        out_shape = jax.ShapeDtypeStruct((BC_pad, H, W), x.dtype)

    grid = (nblk,)

    # Raise the scoped-VMEM limit whenever the working set exceeds the smallest
    # per-generation default (16 MiB on v5e); never request near physical VMEM.
    est = nc * per_chan + (2 << 20)
    cp_kwargs = dict(dimension_semantics=("parallel",))
    if est > 16 * 1024 * 1024:
        cp_kwargs["vmem_limit_bytes"] = int(min(max(est, 16 * 1024 * 1024), vmem_cap))

    cost = pl.CostEstimate(
        flops=2 * (2 * k) * BC_pad * H * W,
        bytes_accessed=2 * BC_pad * H * W * itemsize,
        transcendentals=0,
    )

    kernel = functools.partial(_box_filter_kernel, r=r, w_axis=w_axis, h_axis=h_axis)
    out = pl.pallas_call(
        kernel,
        out_shape=out_shape,
        grid_spec=pltpu.PrefetchScalarGridSpec(
            num_scalar_prefetch=0,
            grid=grid,
            in_specs=[pl.BlockSpec(block, index_map)],
            out_specs=pl.BlockSpec(block, index_map),
        ),
        compiler_params=pltpu.CompilerParams(**cp_kwargs),
        cost_estimate=cost,
    )(xk)

    if channels_last:
        out = out[:, :, :BC].reshape(H, W, B, C)
        return jnp.transpose(out, (2, 3, 0, 1))
    return out[:BC].reshape(B, C, H, W)


def _box_filter_ref(x, r):
    """Pure-JAX reference mirroring the PyTorch depthwise convs."""
    B, C, H, W = x.shape
    k = 2 * r + 1
    kx = jnp.full((C, 1, 1, k), 1.0 / k, dtype=x.dtype)   # (O, I/groups, kh, kw)
    ky = jnp.full((C, 1, k, 1), 1.0 / k, dtype=x.dtype)
    dn = lax.conv_dimension_numbers(x.shape, kx.shape, ("NCHW", "OIHW", "NCHW"))
    y = lax.conv_general_dilated(
        x, kx, window_strides=(1, 1), padding=((0, 0), (r, r)),
        dimension_numbers=dn, feature_group_count=C)
    y = lax.conv_general_dilated(
        y, ky, window_strides=(1, 1), padding=((r, r), (0, 0)),
        dimension_numbers=dn, feature_group_count=C)
    return y


if __name__ == "__main__":
    key = jax.random.PRNGKey(0)
    k1, k2 = jax.random.split(key)

    # Primary check: small shapes implied by the module spec.
    B, C, H, W, r = 2, 4, 16, 16, 2
    x = jax.random.normal(key, (B, C, H, W), dtype=jnp.float32)
    out = jax.block_until_ready(box_filter(x, r))
    ref = _box_filter_ref(x, r)
    assert out.shape == (B, C, H, W)
    assert jnp.allclose(out, ref, atol=1e-5, rtol=1e-5)

    # Lane-dense channels-last path with channel padding and a 2-step grid.
    x2 = jax.random.normal(k1, (2, 72, 16, 16), dtype=jnp.float32)   # BC=144 -> 256
    out2 = jax.block_until_ready(box_filter(x2, 1, block_channels=128))
    assert jnp.allclose(out2, _box_filter_ref(x2, 1), atol=1e-5, rtol=1e-5)

    # Natively lane-aligned W (no wrapper transposes).
    x3 = jax.random.normal(k2, (1, 2, 8, 128), dtype=jnp.float32)
    out3 = jax.block_until_ready(box_filter(x3, 1))
    assert jnp.allclose(out3, _box_filter_ref(x3, 1), atol=1e-5, rtol=1e-5)

    print("KERNEL_OK")
</pallas_src>

<mosaic_0001>
module attributes {stable_mosaic.version = 11 : i64} {
  func.func @_box_filter_kernel(%arg0: i32, %arg1: memref<16x16x8xf32, #tpu.memory_space<vmem>>, %arg2: memref<16x16x8xf32, #tpu.memory_space<vmem>>) attributes {dimension_semantics = [#tpu.dimension_semantics<parallel>], iteration_bounds = array<i64: 1>, scalar_prefetch = 0 : i64, scratch_operands = 0 : i64, tpu.core_type = #tpu.core_type<tc>, window_params = [{transform_indices = @transform_0, window_bounds = array<i64: 16, 16, 8>}, {transform_indices = @transform_1, window_bounds = array<i64: 16, 16, 8>}]} {
    %c0 = arith.constant 0 : index
    %c0_0 = arith.constant 0 : index
    %c0_1 = arith.constant 0 : index
    %0 = vector.load %arg1[%c0, %c0_0, %c0_1] : memref<16x16x8xf32, #tpu.memory_space<vmem>>, vector<16x16x8xf32>
    %cst = arith.constant 0.000000e+00 : f32
    %1 = vector.broadcast %cst : f32 to vector<16x2x8xf32>
    %2 = tpu.concatenate %1, %0, %1 in 1 : vector<16x2x8xf32>, vector<16x16x8xf32>, vector<16x2x8xf32> -> vector<16x20x8xf32>
    %3 = vector.extract_strided_slice %2 {offsets = [0, 0, 0], sizes = [16, 16, 8], strides = [1, 1, 1]} : vector<16x20x8xf32> to vector<16x16x8xf32>
    %4 = vector.extract_strided_slice %2 {offsets = [0, 1, 0], sizes = [16, 16, 8], strides = [1, 1, 1]} : vector<16x20x8xf32> to vector<16x16x8xf32>
    %5 = arith.addf %3, %4 : vector<16x16x8xf32>
    %6 = vector.extract_strided_slice %2 {offsets = [0, 2, 0], sizes = [16, 16, 8], strides = [1, 1, 1]} : vector<16x20x8xf32> to vector<16x16x8xf32>
    %7 = arith.addf %5, %6 : vector<16x16x8xf32>
    %8 = vector.extract_strided_slice %2 {offsets = [0, 3, 0], sizes = [16, 16, 8], strides = [1, 1, 1]} : vector<16x20x8xf32> to vector<16x16x8xf32>
    %9 = arith.addf %7, %8 : vector<16x16x8xf32>
    %10 = vector.extract_strided_slice %2 {offsets = [0, 4, 0], sizes = [16, 16, 8], strides = [1, 1, 1]} : vector<16x20x8xf32> to vector<16x16x8xf32>
    %11 = arith.addf %9, %10 : vector<16x16x8xf32>
    %cst_2 = arith.constant 0.000000e+00 : f32
    %12 = vector.broadcast %cst_2 : f32 to vector<2x16x8xf32>
    %13 = tpu.concatenate %12, %11, %12 in 0 : vector<2x16x8xf32>, vector<16x16x8xf32>, vector<2x16x8xf32> -> vector<20x16x8xf32>
    %14 = vector.extract_strided_slice %13 {offsets = [0, 0, 0], sizes = [16, 16, 8], strides = [1, 1, 1]} : vector<20x16x8xf32> to vector<16x16x8xf32>
    %15 = vector.extract_strided_slice %13 {offsets = [1, 0, 0], sizes = [16, 16, 8], strides = [1, 1, 1]} : vector<20x16x8xf32> to vector<16x16x8xf32>
    %16 = arith.addf %14, %15 : vector<16x16x8xf32>
    %17 = vector.extract_strided_slice %13 {offsets = [2, 0, 0], sizes = [16, 16, 8], strides = [1, 1, 1]} : vector<20x16x8xf32> to vector<16x16x8xf32>
    %18 = arith.addf %16, %17 : vector<16x16x8xf32>
    %19 = vector.extract_strided_slice %13 {offsets = [3, 0, 0], sizes = [16, 16, 8], strides = [1, 1, 1]} : vector<20x16x8xf32> to vector<16x16x8xf32>
    %20 = arith.addf %18, %19 : vector<16x16x8xf32>
    %21 = vector.extract_strided_slice %13 {offsets = [4, 0, 0], sizes = [16, 16, 8], strides = [1, 1, 1]} : vector<20x16x8xf32> to vector<16x16x8xf32>
    %22 = arith.addf %20, %21 : vector<16x16x8xf32>
    %cst_3 = arith.constant 4.000000e-02 : f32
    %23 = vector.broadcast %cst_3 : f32 to vector<16x16x8xf32>
    %24 = arith.mulf %22, %23 : vector<16x16x8xf32>
    %c0_4 = arith.constant 0 : index
    %c0_5 = arith.constant 0 : index
    %c0_6 = arith.constant 0 : index
    %25 = vector.load %arg2[%c0_4, %c0_5, %c0_6] : memref<16x16x8xf32, #tpu.memory_space<vmem>>, vector<16x16x8xf32>
    tpu.vector_store %arg2[%c0_4, %c0_5, %c0_6], %24 {strides = array<i32>} : memref<16x16x8xf32, #tpu.memory_space<vmem>>, vector<16x16x8xf32>,
    return
  }
  func.func @transform_0(%arg0: i32) -> (i32, i32, i32) {
    %c0_i32 = arith.constant 0 : i32
    %c0_i32_0 = arith.constant 0 : i32
    %c0_i32_1 = arith.constant 0 : i32
    return %c0_i32, %c0_i32_0, %arg0 : i32, i32, i32
  }
  func.func @transform_1(%arg0: i32) -> (i32, i32, i32) {
    %c0_i32 = arith.constant 0 : i32
    %c0_i32_0 = arith.constant 0 : i32
    %c0_i32_1 = arith.constant 0 : i32
    return %c0_i32, %c0_i32_0, %arg0 : i32, i32, i32
  }
}

</mosaic_0001>

<llo_original>
// kernel: tpu_custom_call.1
$region0: #{tpu_custom_call.1}
  #allocation0 [shape = 'u32[]', space=smem, size = 0x4, offset = 0x4, fixed_abs, tag = 'smem constant byte address 0x4 - core index']
  #allocation1 [shape = 'u32[72,128]{1,0:T(1,128)}', space=vmem, size = 0x9000, scoped, tag = 'internal scratch']
  %s0 = inlined_call_operand.vmem [shape: f32[16,16,8], index: 0, kind: input, shape index: {}]
  %s1 = inlined_call_operand.vmem [shape: f32[16,16,8], index: 1, kind: output, shape index: {}]
  %s2 = sld [smem:[#allocation0]]
  $region14: #{tpu_custom_call.1} parent=0
    _
  %s4 = ssub.s32 1, %s2
  %s5 = scalar_select 0, %s4, %s2
  // Predicated region
  $region2: #{tpu_custom_call.1} parent=0 // pred_check
    _
  $region3: #{tpu_custom_call.1} parent=0 // pred_check_branch
    %7 = sbr.rel (0) target = $region5
  $region4: #{tpu_custom_call.1} parent=0 // pred_region
    _
  $region5: #{tpu_custom_call.1} parent=0 // pred_fallthru
    _
  %v8 = vld [vmem:[%s0] sm:$0xff]
  %v9 = vld [vmem:[%s0 + $0x8] sm:$0xff]
  %v10 = vld [vmem:[%s0 + $0x10] sm:$0xff]
  %v11 = vld [vmem:[%s0 + $0x18] sm:$0xff]
  %v12 = vld [vmem:[%s0 + $0x20] sm:$0xff]
  %v13 = vld [vmem:[%s0 + $0x28] sm:$0xff]
  %v14 = vld [vmem:[%s0 + $0x30] sm:$0xff]
  %v15 = vld [vmem:[%s0 + $0x38] sm:$0xff]
  %v16 = vld [vmem:[%s0 + $0x40] sm:$0xff]
  %v17 = vld [vmem:[%s0 + $0x48] sm:$0xff]
  %v18 = vld [vmem:[%s0 + $0x50] sm:$0xff]
  %v19 = vld [vmem:[%s0 + $0x58] sm:$0xff]
  %v20 = vld [vmem:[%s0 + $0x60] sm:$0xff]
  %v21 = vld [vmem:[%s0 + $0x68] sm:$0xff]
  %v22 = vld [vmem:[%s0 + $0x70] sm:$0xff]
  %v23 = vld [vmem:[%s0 + $0x78] sm:$0xff]
  %v24 = vld [vmem:[%s0 + $0x80] sm:$0xff]
  %v25 = vld [vmem:[%s0 + $0x88] sm:$0xff]
  %v26 = vld [vmem:[%s0 + $0x90] sm:$0xff]
  %v27 = vld [vmem:[%s0 + $0x98] sm:$0xff]
  %v28 = vld [vmem:[%s0 + $0xa0] sm:$0xff]
  %v29 = vld [vmem:[%s0 + $0xa8] sm:$0xff]
  %v30 = vld [vmem:[%s0 + $0xb0] sm:$0xff]
  %v31 = vld [vmem:[%s0 + $0xb8] sm:$0xff]
  %v32 = vld [vmem:[%s0 + $0xc0] sm:$0xff]
  %v33 = vld [vmem:[%s0 + $0xc8] sm:$0xff]
  %v34 = vld [vmem:[%s0 + $0xd0] sm:$0xff]
  %v35 = vld [vmem:[%s0 + $0xd8] sm:$0xff]
  %v36 = vld [vmem:[%s0 + $0xe0] sm:$0xff]
  %v37 = vld [vmem:[%s0 + $0xe8] sm:$0xff]
  %v38 = vld [vmem:[%s0 + $0xf0] sm:$0xff]
  %v39 = vld [vmem:[%s0 + $0xf8] sm:$0xff]
  %vm72 = vcmask 1041408
  %v73 = vrot.slane %v8, 6
  %v74 = vrot.slane %v9, 6
  %v75 = vsel %vm72, %v73, %v74
  %v76 = vrot.slane %v10, 6
  %v77 = vrot.slane %v11, 6
  %v78 = vsel %vm72, %v76, %v77
  %v79 = vrot.slane %v12, 6
  %v80 = vrot.slane %v13, 6
  %v81 = vsel %vm72, %v79, %v80
  %v82 = vrot.slane %v14, 6
  %v83 = vrot.slane %v15, 6
  %v84 = vsel %vm72, %v82, %v83
  %v85 = vrot.slane %v16, 6
  %v86 = vrot.slane %v17, 6
  %v87 = vsel %vm72, %v85, %v86
  %v88 = vrot.slane %v18, 6
  %v89 = vrot.slane %v19, 6
  %v90 = vsel %vm72, %v88, %v89
  %v91 = vrot.slane %v20, 6
  %v92 = vrot.slane %v21, 6
  %v93 = vsel %vm72, %v91, %v92
  %v94 = vrot.slane %v22, 6
  %v95 = vrot.slane %v23, 6
  %v96 = vsel %vm72, %v94, %v95
  %v97 = vrot.slane %v24, 6
  %v98 = vrot.slane %v25, 6
  %v99 = vsel %vm72, %v97, %v98
  %v100 = vrot.slane %v26, 6
  %v101 = vrot.slane %v27, 6
  %v102 = vsel %vm72, %v100, %v101
  %v103 = vrot.slane %v28, 6
  %v104 = vrot.slane %v29, 6
  %v105 = vsel %vm72, %v103, %v104
  %v106 = vrot.slane %v30, 6
  %v107 = vrot.slane %v31, 6
  %v108 = vsel %vm72, %v106, %v107
  %v109 = vrot.slane %v32, 6
  %v110 = vrot.slane %v33, 6
  %v111 = vsel %vm72, %v109, %v110
  %v112 = vrot.slane %v34, 6
  %v113 = vrot.slane %v35, 6
  %v114 = vsel %vm72, %v112, %v113
  %v115 = vrot.slane %v36, 6
  %v116 = vrot.slane %v37, 6
  %v117 = vsel %vm72, %v115, %v116
  %v118 = vrot.slane %v38, 6
  %v119 = vrot.slane %v39, 6
  %v120 = vsel %vm72, %v118, %v119
  %v169 = vsel %vm72, 0.0, %v73
  %v170 = vsel %vm72, 0.0, %v76
  %v171 = vsel %vm72, 0.0, %v79
  %v172 = vsel %vm72, 0.0, %v82
  %v173 = vsel %vm72, 0.0, %v85
  %v174 = vsel %vm72, 0.0, %v88
  %v175 = vsel %vm72, 0.0, %v91
  %v176 = vsel %vm72, 0.0, %v94
  %v177 = vsel %vm72, 0.0, %v97
  %v178 = vsel %vm72, 0.0, %v100
  %v179 = vsel %vm72, 0.0, %v103
  %v180 = vsel %vm72, 0.0, %v106
  %v181 = vsel %vm72, 0.0, %v109
  %v182 = vsel %vm72, 0.0, %v112
  %v183 = vsel %vm72, 0.0, %v115
  %v184 = vsel %vm72, 0.0, %v118
  %v185 = vsel %vm72, %v74, 0.0
  %v186 = vsel %vm72, %v77, 0.0
  %v187 = vsel %vm72, %v80, 0.0
  %v188 = vsel %vm72, %v83, 0.0
  %v189 = vsel %vm72, %v86, 0.0
  %v190 = vsel %vm72, %v89, 0.0
  %v191 = vsel %vm72, %v92, 0.0
  %v192 = vsel %vm72, %v95, 0.0
  %v193 = vsel %vm72, %v98, 0.0
  %v194 = vsel %vm72, %v101, 0.0
  %v195 = vsel %vm72, %v104, 0.0
  %v196 = vsel %vm72, %v107, 0.0
  %v197 = vsel %vm72, %v110, 0.0
  %v198 = vsel %vm72, %v113, 0.0
  %v199 = vsel %vm72, %v116, 0.0
  %v200 = vsel %vm72, %v119, 0.0
  %vm233 = vcmask 1046528
  %v234 = vrot.slane %v169, 1
  %v235 = vrot.slane %v75, 1
  %v236 = vsel %vm233, %v234, %v235
  %v237 = vrot.slane %v185, 1
  %v238 = vsel %vm233, %v235, %v237
  %v239 = vrot.slane %v170, 1
  %v240 = vrot.slane %v78, 1
  %v241 = vsel %vm233, %v239, %v240
  %v242 = vrot.slane %v186, 1
  %v243 = vsel %vm233, %v240, %v242
  %v244 = vrot.slane %v171, 1
  %v245 = vrot.slane %v81, 1
  %v246 = vsel %vm233, %v244, %v245
  %v247 = vrot.slane %v187, 1
  %v248 = vsel %vm233, %v245, %v247
  %v249 = vrot.slane %v172, 1
  %v250 = vrot.slane %v84, 1
  %v251 = vsel %vm233, %v249, %v250
  %v252 = vrot.slane %v188, 1
  %v253 = vsel %vm233, %v250, %v252
  %v254 = vrot.slane %v173, 1
  %v255 = vrot.slane %v87, 1
  %v256 = vsel %vm233, %v254, %v255
  %v257 = vrot.slane %v189, 1
  %v258 = vsel %vm233, %v255, %v257
  %v259 = vrot.slane %v174, 1
  %v260 = vrot.slane %v90, 1
  %v261 = vsel %vm233, %v259, %v260
  %v262 = vrot.slane %v190, 1
  %v263 = vsel %vm233, %v260, %v262
  %v264 = vrot.slane %v175, 1
  %v265 = vrot.slane %v93, 1
  %v266 = vsel %vm233, %v264, %v265
  %v267 = vrot.slane %v191, 1
  %v268 = vsel %vm233, %v265, %v267
  %v269 = vrot.slane %v176, 1
  %v270 = vrot.slane %v96, 1
  %v271 = vsel %vm233, %v269, %v270
  %v272 = vrot.slane %v192, 1
  %v273 = vsel %vm233, %v270, %v272
  %v274 = vrot.slane %v177, 1
  %v275 = vrot.slane %v99, 1
  %v276 = vsel %vm233, %v274, %v275
  %v277 = vrot.slane %v193, 1
  %v278 = vsel %vm233, %v275, %v277
  %v279 = vrot.slane %v178, 1
  %v280 = vrot.slane %v102, 1
  %v281 = vsel %vm233, %v279, %v280
  %v282 = vrot.slane %v194, 1
  %v283 = vsel %vm233, %v280, %v282
  %v284 = vrot.slane %v179, 1
  %v285 = vrot.slane %v105, 1
  %v286 = vsel %vm233, %v284, %v285
  %v287 = vrot.slane %v195, 1
  %v288 = vsel %vm233, %v285, %v287
  %v289 = vrot.slane %v180, 1
  %v290 = vrot.slane %v108, 1
  %v291 = vsel %vm233, %v289, %v290
  %v292 = vrot.slane %v196, 1
  %v293 = vsel %vm233, %v290, %v292
  %v294 = vrot.slane %v181, 1
  %v295 = vrot.slane %v111, 1
  %v296 = vsel %vm233, %v294, %v295
  %v297 = vrot.slane %v197, 1
  %v298 = vsel %vm233, %v295, %v297
  %v299 = vrot.slane %v182, 1
  %v300 = vrot.slane %v114, 1
  %v301 = vsel %vm233, %v299, %v300
  %v302 = vrot.slane %v198, 1
  %v303 = vsel %vm233, %v300, %v302
  %v304 = vrot.slane %v183, 1
  %v305 = vrot.slane %v117, 1
  %v306 = vsel %vm233, %v304, %v305
  %v307 = vrot.slane %v199, 1
  %v308 = vsel %vm233, %v305, %v307
  %v309 = vrot.slane %v184, 1
  %v310 = vrot.slane %v120, 1
  %v311 = vsel %vm233, %v309, %v310
  %v312 = vrot.slane %v200, 1
  %v313 = vsel %vm233, %v310, %v312
  %v346 = vadd.f32 %v169, %v236
  %v347 = vadd.f32 %v75, %v238
  %v348 = vadd.f32 %v170, %v241
  %v349 = vadd.f32 %v78, %v243
  %v350 = vadd.f32 %v171, %v246
  %v351 = vadd.f32 %v81, %v248
  %v352 = vadd.f32 %v172, %v251
  %v353 = vadd.f32 %v84, %v253
  %v354 = vadd.f32 %v173, %v256
  %v355 = vadd.f32 %v87, %v258
  %v356 = vadd.f32 %v174, %v261
  %v357 = vadd.f32 %v90, %v263
  %v358 = vadd.f32 %v175, %v266
  %v359 = vadd.f32 %v93, %v268
  %v360 = vadd.f32 %v176, %v271
  %v361 = vadd.f32 %v96, %v273
  %v362 = vadd.f32 %v177, %v276
  %v363 = vadd.f32 %v99, %v278
  %v364 = vadd.f32 %v178, %v281
  %v365 = vadd.f32 %v102, %v283
  %v366 = vadd.f32 %v179, %v286
  %v367 = vadd.f32 %v105, %v288
  %v368 = vadd.f32 %v180, %v291
  %v369 = vadd.f32 %v108, %v293
  %v370 = vadd.f32 %v181, %v296
  %v371 = vadd.f32 %v111, %v298
  %v372 = vadd.f32 %v182, %v301
  %v373 = vadd.f32 %v114, %v303
  %v374 = vadd.f32 %v183, %v306
  %v375 = vadd.f32 %v117, %v308
  %v376 = vadd.f32 %v184, %v311
  %v377 = vadd.f32 %v120, %v313
  %vm378 = vcmask 1045504
  %v379 = vrot.slane %v169, 2
  %v380 = vrot.slane %v75, 2
  %v381 = vsel %vm378, %v379, %v380
  %v382 = vrot.slane %v185, 2
  %v383 = vsel %vm378, %v380, %v382
  %v384 = vrot.slane %v170, 2
  %v385 = vrot.slane %v78, 2
  %v386 = vsel %vm378, %v384, %v385
  %v387 = vrot.slane %v186, 2
  %v388 = vsel %vm378, %v385, %v387
  %v389 = vrot.slane %v171, 2
  %v390 = vrot.slane %v81, 2
  %v391 = vsel %vm378, %v389, %v390
  %v392 = vrot.slane %v187, 2
  %v393 = vsel %vm378, %v390, %v392
  %v394 = vrot.slane %v172, 2
  %v395 = vrot.slane %v84, 2
  %v396 = vsel %vm378, %v394, %v395
  %v397 = vrot.slane %v188, 2
  %v398 = vsel %vm378, %v395, %v397
  %v399 = vrot.slane %v173, 2
  %v400 = vrot.slane %v87, 2
  %v401 = vsel %vm378, %v399, %v400
  %v402 = vrot.slane %v189, 2
  %v403 = vsel %vm378, %v400, %v402
  %v404 = vrot.slane %v174, 2
  %v405 = vrot.slane %v90, 2
  %v406 = vsel %vm378, %v404, %v405
  %v407 = vrot.slane %v190, 2
  %v408 = vsel %vm378, %v405, %v407
  %v409 = vrot.slane %v175, 2
  %v410 = vrot.slane %v93, 2
  %v411 = vsel %vm378, %v409, %v410
  %v412 = vrot.slane %v191, 2
  %v413 = vsel %vm378, %v410, %v412
  %v414 = vrot.slane %v176, 2
  %v415 = vrot.slane %v96, 2
  %v416 = vsel %vm378, %v414, %v415
  %v417 = vrot.slane %v192, 2
  %v418 = vsel %vm378, %v415, %v417
  %v419 = vrot.slane %v177, 2
  %v420 = vrot.slane %v99, 2
  %v421 = vsel %vm378, %v419, %v420
  %v422 = vrot.slane %v193, 2
  %v423 = vsel %vm378, %v420, %v422
  %v424 = vrot.slane %v178, 2
  %v425 = vrot.slane %v102, 2
  %v426 = vsel %vm378, %v424, %v425
  %v427 = vrot.slane %v194, 2
  %v428 = vsel %vm378, %v425, %v427
  %v429 = vrot.slane %v179, 2
  %v430 = vrot.slane %v105, 2
  %v431 = vsel %vm378, %v429, %v430
  %v432 = vrot.slane %v195, 2
  %v433 = vsel %vm378, %v430, %v432
  %v434 = vrot.slane %v180, 2
  %v435 = vrot.slane %v108, 2
  %v436 = vsel %vm378, %v434, %v435
  %v437 = vrot.slane %v196, 2
  %v438 = vsel %vm378, %v435, %v437
  %v439 = vrot.slane %v181, 2
  %v440 = vrot.slane %v111, 2
  %v441 = vsel %vm378, %v439, %v440
  %v442 = vrot.slane %v197, 2
  %v443 = vsel %vm378, %v440, %v442
  %v444 = vrot.slane %v182, 2
  %v445 = vrot.slane %v114, 2
  %v446 = vsel %vm378, %v444, %v445
  %v447 = vrot.slane %v198, 2
  %v448 = vsel %vm378, %v445, %v447
  %v449 = vrot.slane %v183, 2
  %v450 = vrot.slane %v117, 2
  %v451 = vsel %vm378, %v449, %v450
  %v452 = vrot.slane %v199, 2
  %v453 = vsel %vm378, %v450, %v452
  %v454 = vrot.slane %v184, 2
  %v455 = vrot.slane %v120, 2
  %v456 = vsel %vm378, %v454, %v455
  %v457 = vrot.slane %v200, 2
  %v458 = vsel %vm378, %v455, %v457
  %v491 = vadd.f32 %v346, %v381
  %v492 = vadd.f32 %v347, %v383
  %v493 = vadd.f32 %v348, %v386
  %v494 = vadd.f32 %v349, %v388
  %v495 = vadd.f32 %v350, %v391
  %v496 = vadd.f32 %v351, %v393
  %v497 = vadd.f32 %v352, %v396
  %v498 = vadd.f32 %v353, %v398
  %v499 = vadd.f32 %v354, %v401
  %v500 = vadd.f32 %v355, %v403
  %v501 = vadd.f32 %v356, %v406
  %v502 = vadd.f32 %v357, %v408
  %v503 = vadd.f32 %v358, %v411
  %v504 = vadd.f32 %v359, %v413
  %v505 = vadd.f32 %v360, %v416
  %v506 = vadd.f32 %v361, %v418
  %v507 = vadd.f32 %v362, %v421
  %v508 = vadd.f32 %v363, %v423
  %v509 = vadd.f32 %v364, %v426
  %v510 = vadd.f32 %v365, %v428
  %v511 = vadd.f32 %v366, %v431
  %v512 = vadd.f32 %v367, %v433
  %v513 = vadd.f32 %v368, %v436
  %v514 = vadd.f32 %v369, %v438
  %v515 = vadd.f32 %v370, %v441
  %v516 = vadd.f32 %v371, %v443
  %v517 = vadd.f32 %v372, %v446
  %v518 = vadd.f32 %v373, %v448
  %v519 = vadd.f32 %v374, %v451
  %v520 = vadd.f32 %v375, %v453
  %v521 = vadd.f32 %v376, %v456
  %v522 = vadd.f32 %v377, %v458
  %vm523 = vcmask 1044480
  %v524 = vrot.slane %v169, 3
  %v525 = vrot.slane %v75, 3
  %v526 = vsel %vm523, %v524, %v525
  %v527 = vrot.slane %v185, 3
  %v528 = vsel %vm523, %v525, %v527
  %v529 = vrot.slane %v170, 3
  %v530 = vrot.slane %v78, 3
  %v531 = vsel %vm523, %v529, %v530
  %v532 = vrot.slane %v186, 3
  %v533 = vsel %vm523, %v530, %v532
  %v534 = vrot.slane %v171, 3
  %v535 = vrot.slane %v81, 3
  %v536 = vsel %vm523, %v534, %v535
  %v537 = vrot.slane %v187, 3
  %v538 = vsel %vm523, %v535, %v537
  %v539 = vrot.slane %v172, 3
  %v540 = vrot.slane %v84, 3
  %v541 = vsel %vm523, %v539, %v540
  %v542 = vrot.slane %v188, 3
  %v543 = vsel %vm523, %v540, %v542
  %v544 = vrot.slane %v173, 3
  %v545 = vrot.slane %v87, 3
  %v546 = vsel %vm523, %v544, %v545
  %v547 = vrot.slane %v189, 3
  %v548 = vsel %vm523, %v545, %v547
  %v549 = vrot.slane %v174, 3
  %v550 = vrot.slane %v90, 3
  %v551 = vsel %vm523, %v549, %v550
  %v552 = vrot.slane %v190, 3
  %v553 = vsel %vm523, %v550, %v552
  %v554 = vrot.slane %v175, 3
  %v555 = vrot.slane %v93, 3
  %v556 = vsel %vm523, %v554, %v555
  %v557 = vrot.slane %v191, 3
  %v558 = vsel %vm523, %v555, %v557
  %v559 = vrot.slane %v176, 3
  %v560 = vrot.slane %v96, 3
  %v561 = vsel %vm523, %v559, %v560
  %v562 = vrot.slane %v192, 3
  %v563 = vsel %vm523, %v560, %v562
  %v564 = vrot.slane %v177, 3
  %v565 = vrot.slane %v99, 3
  %v566 = vsel %vm523, %v564, %v565
  %v567 = vrot.slane %v193, 3
  %v568 = vsel %vm523, %v565, %v567
  %v569 = vrot.slane %v178, 3
  %v570 = vrot.slane %v102, 3
  %v571 = vsel %vm523, %v569, %v570
  %v572 = vrot.slane %v194, 3
  %v573 = vsel %vm523, %v570, %v572
  %v574 = vrot.slane %v179, 3
  %v575 = vrot.slane %v105, 3
  %v576 = vsel %vm523, %v574, %v575
  %v577 = vrot.slane %v195, 3
  %v578 = vsel %vm523, %v575, %v577
  %v579 = vrot.slane %v180, 3
  %v580 = vrot.slane %v108, 3
  %v581 = vsel %vm523, %v579, %v580
  %v582 = vrot.slane %v196, 3
  %v583 = vsel %vm523, %v580, %v582
  %v584 = vrot.slane %v181, 3
  %v585 = vrot.slane %v111, 3
  %v586 = vsel %vm523, %v584, %v585
  %v587 = vrot.slane %v197, 3
  %v588 = vsel %vm523, %v585, %v587
  %v589 = vrot.slane %v182, 3
  %v590 = vrot.slane %v114, 3
  %v591 = vsel %vm523, %v589, %v590
  %v592 = vrot.slane %v198, 3
  %v593 = vsel %vm523, %v590, %v592
  %v594 = vrot.slane %v183, 3
  %v595 = vrot.slane %v117, 3
  %v596 = vsel %vm523, %v594, %v595
  %v597 = vrot.slane %v199, 3
  %v598 = vsel %vm523, %v595, %v597
  %v599 = vrot.slane %v184, 3
  %v600 = vrot.slane %v120, 3
  %v601 = vsel %vm523, %v599, %v600
  %v602 = vrot.slane %v200, 3
  %v603 = vsel %vm523, %v600, %v602
  %v636 = vadd.f32 %v491, %v526
  %v637 = vadd.f32 %v492, %v528
  %v638 = vadd.f32 %v493, %v531
  %v639 = vadd.f32 %v494, %v533
  %v640 = vadd.f32 %v495, %v536
  %v641 = vadd.f32 %v496, %v538
  %v642 = vadd.f32 %v497, %v541
  %v643 = vadd.f32 %v498, %v543
  %v644 = vadd.f32 %v499, %v546
  %v645 = vadd.f32 %v500, %v548
  %v646 = vadd.f32 %v501, %v551
  %v647 = vadd.f32 %v502, %v553
  %v648 = vadd.f32 %v503, %v556
  %v649 = vadd.f32 %v504, %v558
  %v650 = vadd.f32 %v505, %v561
  %v651 = vadd.f32 %v506, %v563
  %v652 = vadd.f32 %v507, %v566
  %v653 = vadd.f32 %v508, %v568
  %v654 = vadd.f32 %v509, %v571
  %v655 = vadd.f32 %v510, %v573
  %v656 = vadd.f32 %v511, %v576
  %v657 = vadd.f32 %v512, %v578
  %v658 = vadd.f32 %v513, %v581
  %v659 = vadd.f32 %v514, %v583
  %v660 = vadd.f32 %v515, %v586
  %v661 = vadd.f32 %v516, %v588
  %v662 = vadd.f32 %v517, %v591
  %v663 = vadd.f32 %v518, %v593
  %v664 = vadd.f32 %v519, %v596
  %v665 = vadd.f32 %v520, %v598
  %v666 = vadd.f32 %v521, %v601
  %v667 = vadd.f32 %v522, %v603
  %vm668 = vcmask 1043456
  %v669 = vrot.slane %v169, 4
  %v670 = vrot.slane %v75, 4
  %v671 = vsel %vm668, %v669, %v670
  %v672 = vrot.slane %v185, 4
  %v673 = vsel %vm668, %v670, %v672
  %v674 = vrot.slane %v170, 4
  %v675 = vrot.slane %v78, 4
  %v676 = vsel %vm668, %v674, %v675
  %v677 = vrot.slane %v186, 4
  %v678 = vsel %vm668, %v675, %v677
  %v679 = vrot.slane %v171, 4
  %v680 = vrot.slane %v81, 4
  %v681 = vsel %vm668, %v679, %v680
  %v682 = vrot.slane %v187, 4
  %v683 = vsel %vm668, %v680, %v682
  %v684 = vrot.slane %v172, 4
  %v685 = vrot.slane %v84, 4
  %v686 = vsel %vm668, %v684, %v685
  %v687 = vrot.slane %v188, 4
  %v688 = vsel %vm668, %v685, %v687
  %v689 = vrot.slane %v173, 4
  %v690 = vrot.slane %v87, 4
  %v691 = vsel %vm668, %v689, %v690
  %v692 = vrot.slane %v189, 4
  %v693 = vsel %vm668, %v690, %v692
  %v694 = vrot.slane %v174, 4
  %v695 = vrot.slane %v90, 4
  %v696 = vsel %vm668, %v694, %v695
  %v697 = vrot.slane %v190, 4
  %v698 = vsel %vm668, %v695, %v697
  %v699 = vrot.slane %v175, 4
  %v700 = vrot.slane %v93, 4
  %v701 = vsel %vm668, %v699, %v700
  %v702 = vrot.slane %v191, 4
  %v703 = vsel %vm668, %v700, %v702
  %v704 = vrot.slane %v176, 4
  %v705 = vrot.slane %v96, 4
  %v706 = vsel %vm668, %v704, %v705
  %v707 = vrot.slane %v192, 4
  %v708 = vsel %vm668, %v705, %v707
  %v709 = vrot.slane %v177, 4
  %v710 = vrot.slane %v99, 4
  %v711 = vsel %vm668, %v709, %v710
  %v712 = vrot.slane %v193, 4
  %v713 = vsel %vm668, %v710, %v712
  %v714 = vrot.slane %v178, 4
  %v715 = vrot.slane %v102, 4
  %v716 = vsel %vm668, %v714, %v715
  %v717 = vrot.slane %v194, 4
  %v718 = vsel %vm668, %v715, %v717
  %v719 = vrot.slane %v179, 4
  %v720 = vrot.slane %v105, 4
  %v721 = vsel %vm668, %v719, %v720
  %v722 = vrot.slane %v195, 4
  %v723 = vsel %vm668, %v720, %v722
  %v724 = vrot.slane %v180, 4
  %v725 = vrot.slane %v108, 4
  %v726 = vsel %vm668, %v724, %v725
  %v727 = vrot.slane %v196, 4
  %v728 = vsel %vm668, %v725, %v727
  %v729 = vrot.slane %v181, 4
  %v730 = vrot.slane %v111, 4
  %v731 = vsel %vm668, %v729, %v730
  %v732 = vrot.slane %v197, 4
  %v733 = vsel %vm668, %v730, %v732
  %v734 = vrot.slane %v182, 4
  %v735 = vrot.slane %v114, 4
  %v736 = vsel %vm668, %v734, %v735
  %v737 = vrot.slane %v198, 4
  %v738 = vsel %vm668, %v735, %v737
  %v739 = vrot.slane %v183, 4
  %v740 = vrot.slane %v117, 4
  %v741 = vsel %vm668, %v739, %v740
  %v742 = vrot.slane %v199, 4
  %v743 = vsel %vm668, %v740, %v742
  %v744 = vrot.slane %v184, 4
  %v745 = vrot.slane %v120, 4
  %v746 = vsel %vm668, %v744, %v745
  %v747 = vrot.slane %v200, 4
  %v748 = vsel %vm668, %v745, %v747
  %v781 = vadd.f32 %v636, %v671
  %v782 = vadd.f32 %v637, %v673
  %v783 = vadd.f32 %v638, %v676
  %v784 = vadd.f32 %v639, %v678
  %v785 = vadd.f32 %v640, %v681
  %v786 = vadd.f32 %v641, %v683
  %v787 = vadd.f32 %v642, %v686
  %v788 = vadd.f32 %v643, %v688
  %v789 = vadd.f32 %v644, %v691
  %v790 = vadd.f32 %v645, %v693
  %v791 = vadd.f32 %v646, %v696
  %v792 = vadd.f32 %v647, %v698
  %v793 = vadd.f32 %v648, %v701
  %v794 = vadd.f32 %v649, %v703
  %v795 = vadd.f32 %v650, %v706
  %v796 = vadd.f32 %v651, %v708
  %v797 = vadd.f32 %v652, %v711
  %v798 = vadd.f32 %v653, %v713
  %v799 = vadd.f32 %v654, %v716
  %v800 = vadd.f32 %v655, %v718
  %v801 = vadd.f32 %v656, %v721
  %v802 = vadd.f32 %v657, %v723
  %v803 = vadd.f32 %v658, %v726
  %v804 = vadd.f32 %v659, %v728
  %v805 = vadd.f32 %v660, %v731
  %v806 = vadd.f32 %v661, %v733
  %v807 = vadd.f32 %v662, %v736
  %v808 = vadd.f32 %v663, %v738
  %v809 = vadd.f32 %v664, %v741
  %v810 = vadd.f32 %v665, %v743
  %v811 = vadd.f32 %v666, %v746
  %v812 = vadd.f32 %v667, %v748
  %v813 = vadd.f32 %v781, 0.0
  %v814 = vadd.f32 %v782, 0.0
  %v815 = vadd.f32 %v781, %v783
  %v816 = vadd.f32 %v782, %v784
  %v817 = vadd.f32 %v783, %v785
  %v818 = vadd.f32 %v784, %v786
  %v819 = vadd.f32 %v785, %v787
  %v820 = vadd.f32 %v786, %v788
  %v821 = vadd.f32 %v787, %v789
  %v822 = vadd.f32 %v788, %v790
  %v823 = vadd.f32 %v789, %v791
  %v824 = vadd.f32 %v790, %v792
  %v825 = vadd.f32 %v791, %v793
  %v826 = vadd.f32 %v792, %v794
  %v827 = vadd.f32 %v793, %v795
  %v828 = vadd.f32 %v794, %v796
  %v829 = vadd.f32 %v795, %v797
  %v830 = vadd.f32 %v796, %v798
  %v831 = vadd.f32 %v797, %v799
  %v832 = vadd.f32 %v798, %v800
  %v833 = vadd.f32 %v799, %v801
  %v834 = vadd.f32 %v800, %v802
  %v835 = vadd.f32 %v801, %v803
  %v836 = vadd.f32 %v802, %v804
  %v837 = vadd.f32 %v803, %v805
  %v838 = vadd.f32 %v804, %v806
  %v839 = vadd.f32 %v805, %v807
  %v840 = vadd.f32 %v806, %v808
  %v841 = vadd.f32 %v807, %v809
  %v842 = vadd.f32 %v808, %v810
  %v843 = vadd.f32 %v813, %v783
  %v844 = vadd.f32 %v814, %v784
  %v845 = vadd.f32 %v815, %v785
  %v846 = vadd.f32 %v816, %v786
  %v847 = vadd.f32 %v817, %v787
  %v848 = vadd.f32 %v818, %v788
  %v849 = vadd.f32 %v819, %v789
  %v850 = vadd.f32 %v820, %v790
  %v851 = vadd.f32 %v821, %v791
  %v852 = vadd.f32 %v822, %v792
  %v853 = vadd.f32 %v823, %v793
  %v854 = vadd.f32 %v824, %v794
  %v855 = vadd.f32 %v825, %v795
  %v856 = vadd.f32 %v826, %v796
  %v857 = vadd.f32 %v827, %v797
  %v858 = vadd.f32 %v828, %v798
  %v859 = vadd.f32 %v829, %v799
  %v860 = vadd.f32 %v830, %v800
  %v861 = vadd.f32 %v831, %v801
  %v862 = vadd.f32 %v832, %v802
  %v863 = vadd.f32 %v833, %v803
  %v864 = vadd.f32 %v834, %v804
  %v865 = vadd.f32 %v835, %v805
  %v866 = vadd.f32 %v836, %v806
  %v867 = vadd.f32 %v837, %v807
  %v868 = vadd.f32 %v838, %v808
  %v869 = vadd.f32 %v839, %v809
  %v870 = vadd.f32 %v840, %v810
  %v871 = vadd.f32 %v841, %v811
  %v872 = vadd.f32 %v842, %v812
  %v873 = vadd.f32 %v843, %v785
  %v874 = vadd.f32 %v844, %v786
  %v875 = vadd.f32 %v845, %v787
  %v876 = vadd.f32 %v846, %v788
  %v877 = vadd.f32 %v847, %v789
  %v878 = vadd.f32 %v848, %v790
  %v879 = vadd.f32 %v849, %v791
  %v880 = vadd.f32 %v850, %v792
  %v881 = vadd.f32 %v851, %v793
  %v882 = vadd.f32 %v852, %v794
  %v883 = vadd.f32 %v853, %v795
  %v884 = vadd.f32 %v854, %v796
  %v885 = vadd.f32 %v855, %v797
  %v886 = vadd.f32 %v856, %v798
  %v887 = vadd.f32 %v857, %v799
  %v888 = vadd.f32 %v858, %v800
  %v889 = vadd.f32 %v859, %v801
  %v890 = vadd.f32 %v860, %v802
  %v891 = vadd.f32 %v861, %v803
  %v892 = vadd.f32 %v862, %v804
  %v893 = vadd.f32 %v863, %v805
  %v894 = vadd.f32 %v864, %v806
  %v895 = vadd.f32 %v865, %v807
  %v896 = vadd.f32 %v866, %v808
  %v897 = vadd.f32 %v867, %v809
  %v898 = vadd.f32 %v868, %v810
  %v899 = vadd.f32 %v869, %v811
  %v900 = vadd.f32 %v870, %v812
  %v901 = vadd.f32 %v871, 0.0
  %v902 = vadd.f32 %v872, 0.0
  %v903 = vadd.f32 %v873, %v787
  %v904 = vadd.f32 %v874, %v788
  %v905 = vadd.f32 %v875, %v789
  %v906 = vadd.f32 %v876, %v790
  %v907 = vadd.f32 %v877, %v791
  %v908 = vadd.f32 %v878, %v792
  %v909 = vadd.f32 %v879, %v793
  %v910 = vadd.f32 %v880, %v794
  %v911 = vadd.f32 %v881, %v795
  %v912 = vadd.f32 %v882, %v796
  %v913 = vadd.f32 %v883, %v797
  %v914 = vadd.f32 %v884, %v798
  %v915 = vadd.f32 %v885, %v799
  %v916 = vadd.f32 %v886, %v800
  %v917 = vadd.f32 %v887, %v801
  %v918 = vadd.f32 %v888, %v802
  %v919 = vadd.f32 %v889, %v803
  %v920 = vadd.f32 %v890, %v804
  %v921 = vadd.f32 %v891, %v805
  %v922 = vadd.f32 %v892, %v806
  %v923 = vadd.f32 %v893, %v807
  %v924 = vadd.f32 %v894, %v808
  %v925 = vadd.f32 %v895, %v809
  %v926 = vadd.f32 %v896, %v810
  %v927 = vadd.f32 %v897, %v811
  %v928 = vadd.f32 %v898, %v812
  %v929 = vadd.f32 %v899, 0.0
  %v930 = vadd.f32 %v900, 0.0
  %v931 = vadd.f32 %v901, 0.0
  %v932 = vadd.f32 %v902, 0.0
  %v933 = vmul.f32 %v873, 0.04
  %v934 = vmul.f32 %v874, 0.04
  %v935 = vmul.f32 %v903, 0.04
  %v936 = vmul.f32 %v904, 0.04
  %v937 = vmul.f32 %v905, 0.04
  %v938 = vmul.f32 %v906, 0.04
  %v939 = vmul.f32 %v907, 0.04
  %v940 = vmul.f32 %v908, 0.04
  %v941 = vmul.f32 %v909, 0.04
  %v942 = vmul.f32 %v910, 0.04
  %v943 = vmul.f32 %v911, 0.04
  %v944 = vmul.f32 %v912, 0.04
  %v945 = vmul.f32 %v913, 0.04
  %v946 = vmul.f32 %v914, 0.04
  %v947 = vmul.f32 %v915, 0.04
  %v948 = vmul.f32 %v916, 0.04
  %v949 = vmul.f32 %v917, 0.04
  %v950 = vmul.f32 %v918, 0.04
  %v951 = vmul.f32 %v919, 0.04
  %v952 = vmul.f32 %v920, 0.04
  %v953 = vmul.f32 %v921, 0.04
  %v954 = vmul.f32 %v922, 0.04
  %v955 = vmul.f32 %v923, 0.04
  %v956 = vmul.f32 %v924, 0.04
  %v957 = vmul.f32 %v925, 0.04
  %v958 = vmul.f32 %v926, 0.04
  %v959 = vmul.f32 %v927, 0.04
  %v960 = vmul.f32 %v928, 0.04
  %v961 = vmul.f32 %v929, 0.04
  %v962 = vmul.f32 %v930, 0.04
  %v963 = vmul.f32 %v931, 0.04
  %v964 = vmul.f32 %v932, 0.04
  %vm965 = vcmask 64512
  %966 = vst.msk [vmem:[%s1] sm:$0xff] %vm965, %v933
  %967 = vst.msk [vmem:[%s1 + $0x8] sm:$0xff] %vm965, %v934
  %968 = vst.msk [vmem:[%s1 + $0x10] sm:$0xff] %vm965, %v935
  %969 = vst.msk [vmem:[%s1 + $0x18] sm:$0xff] %vm965, %v936
  %970 = vst.msk [vmem:[%s1 + $0x20] sm:$0xff] %vm965, %v937
  %971 = vst.msk [vmem:[%s1 + $0x28] sm:$0xff] %vm965, %v938
  %972 = vst.msk [vmem:[%s1 + $0x30] sm:$0xff] %vm965, %v939
  %973 = vst.msk [vmem:[%s1 + $0x38] sm:$0xff] %vm965, %v940
  %974 = vst.msk [vmem:[%s1 + $0x40] sm:$0xff] %vm965, %v941
  %975 = vst.msk [vmem:[%s1 + $0x48] sm:$0xff] %vm965, %v942
  %976 = vst.msk [vmem:[%s1 + $0x50] sm:$0xff] %vm965, %v943
  %977 = vst.msk [vmem:[%s1 + $0x58] sm:$0xff] %vm965, %v944
  %978 = vst.msk [vmem:[%s1 + $0x60] sm:$0xff] %vm965, %v945
  %979 = vst.msk [vmem:[%s1 + $0x68] sm:$0xff] %vm965, %v946
  %980 = vst.msk [vmem:[%s1 + $0x70] sm:$0xff] %vm965, %v947
  %981 = vst.msk [vmem:[%s1 + $0x78] sm:$0xff] %vm965, %v948
  %982 = vst.msk [vmem:[%s1 + $0x80] sm:$0xff] %vm965, %v949
  %983 = vst.msk [vmem:[%s1 + $0x88] sm:$0xff] %vm965, %v950
  %984 = vst.msk [vmem:[%s1 + $0x90] sm:$0xff] %vm965, %v951
  %985 = vst.msk [vmem:[%s1 + $0x98] sm:$0xff] %vm965, %v952
  %986 = vst.msk [vmem:[%s1 + $0xa0] sm:$0xff] %vm965, %v953
  %987 = vst.msk [vmem:[%s1 + $0xa8] sm:$0xff] %vm965, %v954
  %988 = vst.msk [vmem:[%s1 + $0xb0] sm:$0xff] %vm965, %v955
  %989 = vst.msk [vmem:[%s1 + $0xb8] sm:$0xff] %vm965, %v956
  %990 = vst.msk [vmem:[%s1 + $0xc0] sm:$0xff] %vm965, %v957
  %991 = vst.msk [vmem:[%s1 + $0xc8] sm:$0xff] %vm965, %v958
  %992 = vst.msk [vmem:[%s1 + $0xd0] sm:$0xff] %vm965, %v959
  %993 = vst.msk [vmem:[%s1 + $0xd8] sm:$0xff] %vm965, %v960
  %994 = vst.msk [vmem:[%s1 + $0xe0] sm:$0xff] %vm965, %v961
  %995 = vst.msk [vmem:[%s1 + $0xe8] sm:$0xff] %vm965, %v962
  %996 = vst.msk [vmem:[%s1 + $0xf0] sm:$0xff] %vm965, %v963
  %997 = vst.msk [vmem:[%s1 + $0xf8] sm:$0xff] %vm965, %v964
  // Predicated region
  $region6: #{tpu_custom_call.1} parent=0 // pred_check
    _
  $region7: #{tpu_custom_call.1} parent=0 // pred_check_branch
    %999 = sbr.rel (0) target = $region9
  $region8: #{tpu_custom_call.1} parent=0 // pred_region
    _
  $region9: #{tpu_custom_call.1} parent=0 // pred_fallthru
    _
  // Predicated region
  $region10: #{tpu_custom_call.1} parent=0 // pred_check
    _
  $region11: #{tpu_custom_call.1} parent=0 // pred_check_branch
    %1001 = sbr.rel (0) target = $region13
  $region12: #{tpu_custom_call.1} parent=0 // pred_region
    _
  $region13: #{tpu_custom_call.1} parent=0 // pred_fallthru
    _

</llo_original>
